<compile_context>
chip_gen: v6e
topology: v6e:2x2x1
jax: 0.10.0
libtpu: 0.0.40
codegen_flags: <defaults>
</compile_context>

<pallas_src>
import functools

import jax
import jax.numpy as jnp
from jax import lax
from jax.experimental import pallas as pl
from jax.experimental.pallas import tpu as pltpu


def self_attention_kernel(x_ref, xq_ref, wq_ref, bq_ref, wvk_ref, bvk_ref,
                          out_ref, attn_ref):
    """One (batch, query-tile) grid step.

    x_ref    : (1, C, N)   all spatial positions (source of K and V)
    xq_ref   : (1, C, TQ)  this step's query positions
    wq_ref   : (Cq, C)     query 1x1-conv weight
    bq_ref   : (Cq, 1)     query bias
    wvk_ref  : (C+Cq, C)   fused [value; key] 1x1-conv weights (value rows first)
    bvk_ref  : (C+Cq, 1)   fused [value; key] biases
    out_ref  : (1, C, TQ)  output tile, channels-first (lane-dense TQ)
    attn_ref : (1, TQ, N)  attention rows for this query tile (lane-dense N)
    """
    c = out_ref.shape[1]              # value / output channels
    x = x_ref[0]                      # (C, N)   bf16 (or f32)
    xq = xq_ref[0]                    # (C, TQ)

    # Projections: f32 accumulation on the MXU.
    q = jnp.dot(wq_ref[...], xq, preferred_element_type=jnp.float32) + bq_ref[...]    # (Cq, TQ)
    vk = jnp.dot(wvk_ref[...], x, preferred_element_type=jnp.float32) + bvk_ref[...]  # (C+Cq, N)
    v = vk[:c]                        # (C, N)  value rows (sublane-aligned slice)
    k = vk[c:]                        # (Cq, N) key rows

    # energy[i, j] = sum_c q[c, i] * k[c, j]  -> (TQ, N); TN dot_general, no explicit .T.
    energy = lax.dot_general(q, k, (((0,), (0,)), ((), ())),
                             preferred_element_type=jnp.float32)

    # Numerically stable softmax over keys; reciprocal goes to the EUP slot.
    m = jnp.max(energy, axis=-1, keepdims=True)
    p = jnp.exp(energy - m)
    s = jnp.sum(p, axis=-1, keepdims=True)
    attn = p * pl.reciprocal(s, approx=True)                                           # (TQ, N)
    attn_ref[0] = attn.astype(attn_ref.dtype)

    # out[c, i] = sum_j v[c, j] * attn[i, j]  -> (C, TQ); NT dot_general (contract over keys),
    # bf16 operands with f32 accumulation.
    out = lax.dot_general(v.astype(x.dtype), attn.astype(x.dtype),
                          (((1,), (1,)), ((), ())),
                          preferred_element_type=jnp.float32)
    out_ref[0] = out.astype(out_ref.dtype)


def _pick_query_tile(n):
    """Largest lane-aligned query tile dividing N whose (TQ, N) f32 temporaries +
    double-buffered attention output block stay well under v7x's 64 MiB VMEM."""
    budget = 44 * 1024 * 1024
    for cand in (512, 256, 128):
        if n % cand == 0 and 5 * cand * n * 4 <= budget:
            return cand
    for cand in (512, 256, 128):
        if n % cand == 0:
            return cand
    return n  # tiny inputs: single whole-N tile (block dims == full array dims)


def self_attention(x_nchw, wq, bq, wk, bk, wv, bv, *, tq=None, use_bf16=True):
    """x_nchw: (B, C, W, H). Conv weights are (C_out, C_in) (1x1 kernels squeezed),
    biases (C_out,). Returns (out (B, C, W, H) f32, attention (B, N, N) f32)."""
    B, C, W, H = x_nchw.shape
    N = W * H
    Cq = wq.shape[0]

    if tq is None:
        tq = _pick_query_tile(N)
    assert N % tq == 0 and (tq % 128 == 0 or tq == N), (N, tq)

    in_dtype = jnp.bfloat16 if use_bf16 else jnp.float32

    # NCHW -> (B, C, N): pure reshape (matches torch .view), no transpose needed.
    x_bcn = x_nchw.reshape(B, C, N).astype(in_dtype)

    wq_p = wq.astype(in_dtype)                                              # (Cq, C)
    bq_p = bq.reshape(Cq, 1).astype(jnp.float32)
    # Fused [value; key] projection; value rows first keeps the v-slice sublane aligned.
    wvk_p = jnp.concatenate([wv, wk], axis=0).astype(in_dtype)              # (C+Cq, C)
    bvk_p = jnp.concatenate([bv, bk], axis=0).reshape(C + Cq, 1).astype(jnp.float32)

    const_spec = lambda shape: pl.BlockSpec(shape, lambda b, i: (0, 0))

    out_bcn, attn = pl.pallas_call(
        self_attention_kernel,
        out_shape=(
            jax.ShapeDtypeStruct((B, C, N), jnp.float32),
            jax.ShapeDtypeStruct((B, N, N), jnp.float32),
        ),
        grid_spec=pltpu.PrefetchScalarGridSpec(
            num_scalar_prefetch=0,
            grid=(B, N // tq),
            in_specs=[
                pl.BlockSpec((1, C, N), lambda b, i: (b, 0, 0)),    # x, all positions (K/V)
                pl.BlockSpec((1, C, tq), lambda b, i: (b, 0, i)),   # x, query tile
                const_spec((Cq, C)),                                 # Wq
                const_spec((Cq, 1)),                                 # bq
                const_spec((C + Cq, C)),                             # [Wv; Wk]
                const_spec((C + Cq, 1)),                             # [bv; bk]
            ],
            out_specs=[
                pl.BlockSpec((1, C, tq), lambda b, i: (b, 0, i)),    # out (B, C, N)
                pl.BlockSpec((1, tq, N), lambda b, i: (b, i, 0)),    # attention (B, N, N)
            ],
        ),
        compiler_params=pltpu.CompilerParams(
            dimension_semantics=("parallel", "parallel"),
            vmem_limit_bytes=64 * 1024 * 1024,
        ),
    )(x_bcn, x_bcn, wq_p, bq_p, wvk_p, bvk_p)

    # (B, C, N) -> (B, C, W, H): pure reshape (matches torch .view).
    return out_bcn.reshape(B, C, W, H), attn


def self_attention_ref(x_nchw, wq, bq, wk, bk, wv, bv):
    """Plain-JAX f32 reference mirroring the PyTorch forward exactly."""
    B, C, W, H = x_nchw.shape
    N = W * H
    x = x_nchw.reshape(B, C, N)                                   # (B, C, N)
    q = jnp.einsum('oc,bcn->bon', wq, x) + bq[None, :, None]      # (B, Cq, N)
    k = jnp.einsum('oc,bcn->bon', wk, x) + bk[None, :, None]      # (B, Cq, N)
    v = jnp.einsum('oc,bcn->bon', wv, x) + bv[None, :, None]      # (B, C, N)
    energy = jnp.einsum('bci,bcj->bij', q, k)                     # (B, N, N)
    attn = jax.nn.softmax(energy, axis=-1)
    out = jnp.einsum('bcj,bij->bci', v, attn)                     # (B, C, N)
    return out.reshape(B, C, W, H), attn


if __name__ == "__main__":
    B, C, W, H = 2, 16, 16, 16          # in_dim=16 -> query/key channels = 2
    Cq = C // 8
    N = W * H

    key = jax.random.PRNGKey(0)
    kx, kwq, kbq, kwk, kbk, kwv, kbv = jax.random.split(key, 7)

    x = jax.random.normal(kx, (B, C, W, H), dtype=jnp.float32)
    # Conv2d(in_dim, out_dim, kernel_size=1) weights with the 1x1 kernel squeezed to (out, in).
    wq = 0.1 * jax.random.normal(kwq, (Cq, C), dtype=jnp.float32)
    bq = 0.1 * jax.random.normal(kbq, (Cq,), dtype=jnp.float32)
    wk = 0.1 * jax.random.normal(kwk, (Cq, C), dtype=jnp.float32)
    bk = 0.1 * jax.random.normal(kbk, (Cq,), dtype=jnp.float32)
    wv = 0.1 * jax.random.normal(kwv, (C, C), dtype=jnp.float32)
    bv = 0.1 * jax.random.normal(kbv, (C,), dtype=jnp.float32)

    # tq=128 -> grid (B, 2): exercises the multi-tile query axis at this small N=256.
    fn = jax.jit(functools.partial(self_attention, tq=128))
    out, attn = fn(x, wq, bq, wk, bk, wv, bv)
    out = jax.block_until_ready(out)
    attn = jax.block_until_ready(attn)

    out_ref, attn_ref = self_attention_ref(x, wq, bq, wk, bk, wv, bv)
    # bf16 matmul inputs + approx reciprocal => slightly looser tolerances vs the f32 reference.
    assert jnp.allclose(out, out_ref, atol=1e-2, rtol=1e-2), "output mismatch"
    assert jnp.allclose(attn, attn_ref, atol=1e-3, rtol=1e-2), "attention mismatch"

    print("KERNEL_OK")
</pallas_src>

<mosaic_0001>
module attributes {stable_mosaic.version = 11 : i64} {
  func.func @self_attention_kernel(%arg0: i32, %arg1: i32, %arg2: memref<1x16x256xbf16, #tpu.memory_space<vmem>>, %arg3: memref<1x16x128xbf16, #tpu.memory_space<vmem>>, %arg4: memref<2x16xbf16, #tpu.memory_space<vmem>>, %arg5: memref<2x1xf32, #tpu.memory_space<vmem>>, %arg6: memref<18x16xbf16, #tpu.memory_space<vmem>>, %arg7: memref<18x1xf32, #tpu.memory_space<vmem>>, %arg8: memref<1x16x128xf32, #tpu.memory_space<vmem>>, %arg9: memref<1x128x256xf32, #tpu.memory_space<vmem>>) attributes {dimension_semantics = [#tpu.dimension_semantics<parallel>, #tpu.dimension_semantics<parallel>], iteration_bounds = array<i64: 2, 2>, scalar_prefetch = 0 : i64, scratch_operands = 0 : i64, tpu.core_type = #tpu.core_type<tc>, window_params = [{transform_indices = @transform_0, window_bounds = array<i64: 1, 16, 256>}, {transform_indices = @transform_1, window_bounds = array<i64: 1, 16, 128>}, {pipeline_mode = #tpu.pipeline_mode<synchronous>, transform_indices = @transform_2, window_bounds = array<i64: 2, 16>}, {pipeline_mode = #tpu.pipeline_mode<synchronous>, transform_indices = @transform_3, window_bounds = array<i64: 2, 1>}, {pipeline_mode = #tpu.pipeline_mode<synchronous>, transform_indices = @transform_4, window_bounds = array<i64: 18, 16>}, {pipeline_mode = #tpu.pipeline_mode<synchronous>, transform_indices = @transform_5, window_bounds = array<i64: 18, 1>}, {transform_indices = @transform_6, window_bounds = array<i64: 1, 16, 128>}, {transform_indices = @transform_7, window_bounds = array<i64: 1, 128, 256>}]} {
    %c0 = arith.constant 0 : index
    %c0_0 = arith.constant 0 : index
    %c0_1 = arith.constant 0 : index
    %0 = vector.load %arg2[%c0, %c0_0, %c0_1] : memref<1x16x256xbf16, #tpu.memory_space<vmem>>, vector<1x16x256xbf16>
    %1 = vector.shape_cast %0 : vector<1x16x256xbf16> to vector<16x256xbf16>
    %c0_2 = arith.constant 0 : index
    %c0_3 = arith.constant 0 : index
    %c0_4 = arith.constant 0 : index
    %2 = vector.load %arg3[%c0_2, %c0_3, %c0_4] : memref<1x16x128xbf16, #tpu.memory_space<vmem>>, vector<1x16x128xbf16>
    %3 = vector.shape_cast %2 : vector<1x16x128xbf16> to vector<16x128xbf16>
    %c0_5 = arith.constant 0 : index
    %c0_6 = arith.constant 0 : index
    %4 = vector.load %arg4[%c0_5, %c0_6] : memref<2x16xbf16, #tpu.memory_space<vmem>>, vector<2x16xbf16>
    %cst = arith.constant dense<0.000000e+00> : vector<2x128xf32>
    %5 = tpu.matmul %4, %3, %cst {dimension_numbers = #tpu.dot_dimension_numbers<[1], [0], [0], [1], [0, 0, 1, 1], [], []>} : vector<2x16xbf16>, vector<16x128xbf16>, vector<2x128xf32> -> vector<2x128xf32>
    %c0_7 = arith.constant 0 : index
    %c0_8 = arith.constant 0 : index
    %6 = vector.load %arg5[%c0_7, %c0_8] : memref<2x1xf32, #tpu.memory_space<vmem>>, vector<2x1xf32>
    %7 = vector.broadcast %6 : vector<2x1xf32> to vector<2x128xf32>
    %8 = arith.addf %5, %7 : vector<2x128xf32>
    %c0_9 = arith.constant 0 : index
    %c0_10 = arith.constant 0 : index
    %9 = vector.load %arg6[%c0_9, %c0_10] : memref<18x16xbf16, #tpu.memory_space<vmem>>, vector<18x16xbf16>
    %cst_11 = arith.constant dense<0.000000e+00> : vector<18x256xf32>
    %10 = tpu.matmul %9, %1, %cst_11 {dimension_numbers = #tpu.dot_dimension_numbers<[1], [0], [0], [1], [0, 0, 1, 1], [], []>} : vector<18x16xbf16>, vector<16x256xbf16>, vector<18x256xf32> -> vector<18x256xf32>
    %c0_12 = arith.constant 0 : index
    %c0_13 = arith.constant 0 : index
    %11 = vector.load %arg7[%c0_12, %c0_13] : memref<18x1xf32, #tpu.memory_space<vmem>>, vector<18x1xf32>
    %12 = vector.broadcast %11 : vector<18x1xf32> to vector<18x256xf32>
    %13 = arith.addf %10, %12 : vector<18x256xf32>
    %14 = vector.extract_strided_slice %13 {offsets = [0, 0], sizes = [16, 256], strides = [1, 1]} : vector<18x256xf32> to vector<16x256xf32>
    %15 = vector.extract_strided_slice %13 {offsets = [16, 0], sizes = [2, 256], strides = [1, 1]} : vector<18x256xf32> to vector<2x256xf32>
    %cst_14 = arith.constant dense<0.000000e+00> : vector<128x256xf32>
    %16 = tpu.matmul %8, %15, %cst_14 {dimension_numbers = #tpu.dot_dimension_numbers<[0], [0], [1], [1], [0, 1, 1, 1], [], []>} : vector<2x128xf32>, vector<2x256xf32>, vector<128x256xf32> -> vector<128x256xf32>
    %cst_15 = arith.constant dense<0xFF800000> : vector<128xf32>
    %17 = vector.multi_reduction <maximumf>, %16, %cst_15 [1] : vector<128x256xf32> to vector<128xf32>
    %18 = vector.shape_cast %17 : vector<128xf32> to vector<128x1xf32>
    %19 = vector.broadcast %18 : vector<128x1xf32> to vector<128x256xf32>
    %20 = arith.subf %16, %19 : vector<128x256xf32>
    %21 = math.exp %20 : vector<128x256xf32>
    %cst_16 = arith.constant dense<0.000000e+00> : vector<128xf32>
    %22 = vector.multi_reduction <add>, %21, %cst_16 [1] : vector<128x256xf32> to vector<128xf32>
    %23 = vector.shape_cast %22 : vector<128xf32> to vector<128x1xf32>
    %24 = tpu.reciprocal %23 {approx = true} : vector<128x1xf32> -> vector<128x1xf32>
    %25 = vector.broadcast %24 : vector<128x1xf32> to vector<128x256xf32>
    %26 = arith.mulf %21, %25 : vector<128x256xf32>
    %c0_17 = arith.constant 0 : index
    %c0_18 = arith.constant 0 : index
    %c0_19 = arith.constant 0 : index
    %27 = vector.load %arg9[%c0_17, %c0_18, %c0_19] : memref<1x128x256xf32, #tpu.memory_space<vmem>>, vector<1x128x256xf32>
    %28 = vector.shape_cast %27 : vector<1x128x256xf32> to vector<128x256xf32>
    %29 = vector.shape_cast %26 : vector<128x256xf32> to vector<1x128x256xf32>
    tpu.vector_store %arg9[%c0_17, %c0_18, %c0_19], %29 {strides = array<i32>} : memref<1x128x256xf32, #tpu.memory_space<vmem>>, vector<1x128x256xf32>,
    %30 = arith.truncf %14 : vector<16x256xf32> to vector<16x256xbf16>
    %31 = arith.truncf %26 : vector<128x256xf32> to vector<128x256xbf16>
    %cst_20 = arith.constant dense<0.000000e+00> : vector<16x128xf32>
    %32 = tpu.matmul %30, %31, %cst_20 {dimension_numbers = #tpu.dot_dimension_numbers<[1], [1], [0], [0], [0, 0, 1, 0], [], []>} : vector<16x256xbf16>, vector<128x256xbf16>, vector<16x128xf32> -> vector<16x128xf32>
    %c0_21 = arith.constant 0 : index
    %c0_22 = arith.constant 0 : index
    %c0_23 = arith.constant 0 : index
    %33 = vector.load %arg8[%c0_21, %c0_22, %c0_23] : memref<1x16x128xf32, #tpu.memory_space<vmem>>, vector<1x16x128xf32>
    %34 = vector.shape_cast %33 : vector<1x16x128xf32> to vector<16x128xf32>
    %35 = vector.shape_cast %32 : vector<16x128xf32> to vector<1x16x128xf32>
    tpu.vector_store %arg8[%c0_21, %c0_22, %c0_23], %35 {strides = array<i32>} : memref<1x16x128xf32, #tpu.memory_space<vmem>>, vector<1x16x128xf32>,
    return
  }
  func.func @transform_0(%arg0: i32, %arg1: i32) -> (i32, i32, i32) {
    %c0_i32 = arith.constant 0 : i32
    %c0_i32_0 = arith.constant 0 : i32
    %c0_i32_1 = arith.constant 0 : i32
    return %arg0, %c0_i32, %c0_i32_0 : i32, i32, i32
  }
  func.func @transform_1(%arg0: i32, %arg1: i32) -> (i32, i32, i32) {
    %c0_i32 = arith.constant 0 : i32
    %c0_i32_0 = arith.constant 0 : i32
    return %arg0, %c0_i32, %arg1 : i32, i32, i32
  }
  func.func @transform_2(%arg0: i32, %arg1: i32) -> (i32, i32) {
    %c0_i32 = arith.constant 0 : i32
    %c0_i32_0 = arith.constant 0 : i32
    %c0_i32_1 = arith.constant 0 : i32
    return %c0_i32, %c0_i32_0 : i32, i32
  }
  func.func @transform_3(%arg0: i32, %arg1: i32) -> (i32, i32) {
    %c0_i32 = arith.constant 0 : i32
    %c0_i32_0 = arith.constant 0 : i32
    %c0_i32_1 = arith.constant 0 : i32
    return %c0_i32, %c0_i32_0 : i32, i32
  }
  func.func @transform_4(%arg0: i32, %arg1: i32) -> (i32, i32) {
    %c0_i32 = arith.constant 0 : i32
    %c0_i32_0 = arith.constant 0 : i32
    %c0_i32_1 = arith.constant 0 : i32
    return %c0_i32, %c0_i32_0 : i32, i32
  }
  func.func @transform_5(%arg0: i32, %arg1: i32) -> (i32, i32) {
    %c0_i32 = arith.constant 0 : i32
    %c0_i32_0 = arith.constant 0 : i32
    %c0_i32_1 = arith.constant 0 : i32
    return %c0_i32, %c0_i32_0 : i32, i32
  }
  func.func @transform_6(%arg0: i32, %arg1: i32) -> (i32, i32, i32) {
    %c0_i32 = arith.constant 0 : i32
    %c0_i32_0 = arith.constant 0 : i32
    return %arg0, %c0_i32, %arg1 : i32, i32, i32
  }
  func.func @transform_7(%arg0: i32, %arg1: i32) -> (i32, i32, i32) {
    %c0_i32 = arith.constant 0 : i32
    %c0_i32_0 = arith.constant 0 : i32
    return %arg0, %arg1, %c0_i32 : i32, i32, i32
  }
}

</mosaic_0001>

<llo_original>
// kernel: self_attention.1
$region0: #{self_attention.1}
  #allocation0 [shape = 'u32[]', space=smem, size = 0x4, offset = 0x4, fixed_abs, tag = 'smem constant byte address 0x4 - core index']
  #allocation1 [shape = 'u32[144,128]{1,0:T(1,128)}', space=vmem, size = 0x12000, scoped, tag = 'internal scratch']
  %s0 = inlined_call_operand.vmem [shape: bf16[2,16,256], index: 0, kind: input, shape index: {}, may-alias: {0,1}]
  %s1 = inlined_call_operand.vmem [shape: bf16[2,16,256], index: 1, kind: input, shape index: {}, may-alias: {0,1}]
  %s2 = inlined_call_operand.vmem [shape: bf16[2,16], index: 2, kind: input, shape index: {}]
  %s3 = inlined_call_operand.vmem [shape: f32[2,1], index: 3, kind: input, shape index: {}]
  %s4 = inlined_call_operand.vmem [shape: bf16[18,16], index: 4, kind: input, shape index: {}]
  %s5 = inlined_call_operand.vmem [shape: f32[18,1], index: 5, kind: input, shape index: {}]
  %s6 = inlined_call_operand.vmem [shape: f32[2,16,256], index: 6, kind: output, shape index: {0}]
  %s7 = inlined_call_operand.hbm [shape: f32[2,256,256], index: 7, kind: output, shape index: {1}]
  %8 = xla_tuple %s6, %s7
  %s9 = sld [smem:[#allocation0]]
  $region140: #{self_attention.1} parent=0
    _
  %s11 = ssub.s32 1, %s9
  %s12 = scalar_select 0, %s11, %s9
  $region1: #{self_attention.1} parent=0
    #allocation2 [shape = 'u8[8192]{0}', space=vmem, size = 0x2000, scoped, tag = 'input window, operand 1']
    #allocation3 [shape = 'u8[16384]{0}', space=vmem, size = 0x4000, scoped, tag = 'output window, operand 0']
    #allocation4 [shape = 'u8[262144]{0}', space=vmem, size = 0x40000, scoped, tag = 'output window, operand 1']
    #allocation5 [shape = 's32[2]{0}', space=sflag, size = 0x8, scoped, tag = 'scoped memory for self_attention.1']
    %13 = vsyncpa [#allocation5], 0
    %s14 = scalar_lea.sflag [#allocation5], 1
    %15 = vsyncpa %s14, 0
    loop: start=0, step=1, limit=6
    $region2: #{self_attention.1} parent=1 // loop_pre_header
      _
    $region3: #{self_attention.1} parent=1 // loop_header
      %s17 = sphi 0, %s21
      %p18 = scmp.ge.s32.totalorder %s17, 6
      %s24 = sphi 0, %s36
      %s25 = sphi 0, %s32
      %s26 = sphi 0, %s24
      %s27 = sphi 0, %s25
      %s28 = sphi 0, %s26
      %s29 = sphi 0, %s27
      %s39 = sphi 0, %s41
      %s42 = sphi 0, %s39
      %s43 = sphi 0, %s42
      %s59 = sphi 0, %s43
      %s67 = sphi 0, %s69
      %s70 = sphi 0, %s67
      %s71 = sphi 0, %s70
      %s87 = sphi 0, %s71
      %s91 = sphi 0, %s91
      %s93 = sphi 0, %s91
      %s94 = sphi 0, %s93
      %s108 = sphi 0, %s94
      %s112 = sphi 0, %s112
      %s114 = sphi 0, %s112
      %s115 = sphi 0, %s114
      %s129 = sphi 0, %s115
      %s133 = sphi 0, %s133
      %s135 = sphi 0, %s133
      %s136 = sphi 0, %s135
      %s150 = sphi 0, %s136
      %s154 = sphi 0, %s154
      %s156 = sphi 0, %s154
      %s157 = sphi 0, %s156
      %s171 = sphi 0, %s157
      %s179 = sphi 0, %s181
      %s182 = sphi 0, %s179
      %s183 = sphi 0, %s182
      %s199 = sphi 0, %s183
      %s207 = sphi 0, %s209
      %s210 = sphi 0, %s207
      %s211 = sphi 0, %s210
      %s227 = sphi 0, %s211
    $region4: #{self_attention.1} parent=1 // loop_header_branch
      %20 = sbr.rel (%p18) target = $region8
    $region5: #{self_attention.1} parent=1 // loop_body
      %s22 = ssub.s32 %s17, 1
      %s23 = ssub.s32 %s17, 2
      %s30 = sadd.s32 1, %s25
      %p31 = scmp.ge.s32.totalorder %s30, 2
      %s32 = scalar_select %p31, 0, %s30
      %s33 = sadd.s32 1, %s24
      %s34 = scalar_select %p31, %s33, %s24
      %p35 = scmp.ge.s32.totalorder %s34, 2
      %s36 = scalar_select %p35, 0, %s34
      %s37 = ssub.s32 %s24, %s36
      %p38 = scmp.eq.s32.totalorder %s37, 0
      %s40 = sadd.s32 %s39, 1
      %s41 = scalar_select %p38, %s39, %s40
      %p44 = pneg %p38
      %p45 = scmp.eq.s32.totalorder %s17, 3
      %p46 = por %p44, %p45
      %p47 = scmp.ne.s32.totalorder %s39, %s42
      %p48 = scmp.eq.s32.totalorder %s17, 0
      %p49 = por %p47, %p48
      %p50 = scmp.ne.s32.totalorder %s39, %s42
      %p51 = scmp.eq.s32.totalorder %s22, 3
      %p52 = por %p50, %p51
      %p53 = scmp.ne.s32.totalorder %s42, %s43
      %p54 = scmp.eq.s32.totalorder %s22, 0
      %p55 = por %p53, %p54
      %p56 = scmp.ne.s32.totalorder %s42, %s43
      %p57 = scmp.eq.s32.totalorder %s23, 3
      %p58 = por %p56, %p57
      %p60 = scmp.ne.s32.totalorder %s43, %s59
      %p61 = scmp.eq.s32.totalorder %s23, 0
      %p62 = por %p60, %p61
      %s63 = ssub.s32 %s24, %s36
      %s64 = ssub.s32 %s25, %s32
      %s65 = sor.u32 %s63, %s64
      %p66 = scmp.eq.s32.totalorder %s65, 0
      %s68 = sadd.s32 %s67, 1
      %s69 = scalar_select %p66, %s67, %s68
      %p72 = pneg %p66
      %p73 = scmp.eq.s32.totalorder %s17, 3
      %p74 = por %p72, %p73
      %p75 = scmp.ne.s32.totalorder %s67, %s70
      %p76 = scmp.eq.s32.totalorder %s17, 0
      %p77 = por %p75, %p76
      %p78 = scmp.ne.s32.totalorder %s67, %s70
      %p79 = scmp.eq.s32.totalorder %s22, 3
      %p80 = por %p78, %p79
      %p81 = scmp.ne.s32.totalorder %s70, %s71
      %p82 = scmp.eq.s32.totalorder %s22, 0
      %p83 = por %p81, %p82
      %p84 = scmp.ne.s32.totalorder %s70, %s71
      %p85 = scmp.eq.s32.totalorder %s23, 3
      %p86 = por %p84, %p85
      %p88 = scmp.ne.s32.totalorder %s71, %s87
      %p89 = scmp.eq.s32.totalorder %s23, 0
      %p90 = por %p88, %p89
      %s92 = sadd.s32 %s91, 1
      %p95 = scmp.eq.s32.totalorder %s17, 3
      %p96 = scmp.ne.s32.totalorder %s91, %s93
      %p97 = scmp.eq.s32.totalorder %s17, 0
      %p98 = por %p96, %p97
      %p99 = scmp.ne.s32.totalorder %s91, %s93
      %p100 = scmp.eq.s32.totalorder %s22, 3
      %p101 = por %p99, %p100
      %p102 = scmp.ne.s32.totalorder %s93, %s94
      %p103 = scmp.eq.s32.totalorder %s22, 0
      %p104 = por %p102, %p103
      %p105 = scmp.ne.s32.totalorder %s93, %s94
      %p106 = scmp.eq.s32.totalorder %s23, 3
      %p107 = por %p105, %p106
      %p109 = scmp.ne.s32.totalorder %s94, %s108
      %p110 = scmp.eq.s32.totalorder %s23, 0
      %p111 = por %p109, %p110
      %s113 = sadd.s32 %s112, 1
      %p116 = scmp.eq.s32.totalorder %s17, 3
      %p117 = scmp.ne.s32.totalorder %s112, %s114
      %p118 = scmp.eq.s32.totalorder %s17, 0
      %p119 = por %p117, %p118
      %p120 = scmp.ne.s32.totalorder %s112, %s114
      %p121 = scmp.eq.s32.totalorder %s22, 3
      %p122 = por %p120, %p121
      %p123 = scmp.ne.s32.totalorder %s114, %s115
      %p124 = scmp.eq.s32.totalorder %s22, 0
      %p125 = por %p123, %p124
      %p126 = scmp.ne.s32.totalorder %s114, %s115
      %p127 = scmp.eq.s32.totalorder %s23, 3
      %p128 = por %p126, %p127
      %p130 = scmp.ne.s32.totalorder %s115, %s129
      %p131 = scmp.eq.s32.totalorder %s23, 0
      %p132 = por %p130, %p131
      %s134 = sadd.s32 %s133, 1
      %p137 = scmp.eq.s32.totalorder %s17, 3
      %p138 = scmp.ne.s32.totalorder %s133, %s135
      %p139 = scmp.eq.s32.totalorder %s17, 0
      %p140 = por %p138, %p139
      %p141 = scmp.ne.s32.totalorder %s133, %s135
      %p142 = scmp.eq.s32.totalorder %s22, 3
      %p143 = por %p141, %p142
      %p144 = scmp.ne.s32.totalorder %s135, %s136
      %p145 = scmp.eq.s32.totalorder %s22, 0
      %p146 = por %p144, %p145
      %p147 = scmp.ne.s32.totalorder %s135, %s136
      %p148 = scmp.eq.s32.totalorder %s23, 3
      %p149 = por %p147, %p148
      %p151 = scmp.ne.s32.totalorder %s136, %s150
      %p152 = scmp.eq.s32.totalorder %s23, 0
      %p153 = por %p151, %p152
      %s155 = sadd.s32 %s154, 1
      %p158 = scmp.eq.s32.totalorder %s17, 3
      %p159 = scmp.ne.s32.totalorder %s154, %s156
      %p160 = scmp.eq.s32.totalorder %s17, 0
      %p161 = por %p159, %p160
      %p162 = scmp.ne.s32.totalorder %s154, %s156
      %p163 = scmp.eq.s32.totalorder %s22, 3
      %p164 = por %p162, %p163
      %p165 = scmp.ne.s32.totalorder %s156, %s157
      %p166 = scmp.eq.s32.totalorder %s22, 0
      %p167 = por %p165, %p166
      %p168 = scmp.ne.s32.totalorder %s156, %s157
      %p169 = scmp.eq.s32.totalorder %s23, 3
      %p170 = por %p168, %p169
      %p172 = scmp.ne.s32.totalorder %s157, %s171
      %p173 = scmp.eq.s32.totalorder %s23, 0
      %p174 = por %p172, %p173
      %s175 = ssub.s32 %s24, %s36
      %s176 = ssub.s32 %s25, %s32
      %s177 = sor.u32 %s175, %s176
      %p178 = scmp.eq.s32.totalorder %s177, 0
      %s180 = sadd.s32 %s179, 1
      %s181 = scalar_select %p178, %s179, %s180
      %p184 = pneg %p178
      %p185 = scmp.eq.s32.totalorder %s17, 3
      %p186 = por %p184, %p185
      %p187 = scmp.ne.s32.totalorder %s179, %s182
      %p188 = scmp.eq.s32.totalorder %s17, 0
      %p189 = por %p187, %p188
      %p190 = scmp.ne.s32.totalorder %s179, %s182
      %p191 = scmp.eq.s32.totalorder %s22, 3
      %p192 = por %p190, %p191
      %p193 = scmp.ne.s32.totalorder %s182, %s183
      %p194 = scmp.eq.s32.totalorder %s22, 0
      %p195 = por %p193, %p194
      %p196 = scmp.ne.s32.totalorder %s182, %s183
      %p197 = scmp.eq.s32.totalorder %s23, 3
      %p198 = por %p196, %p197
      %p200 = scmp.ne.s32.totalorder %s183, %s199
      %p201 = scmp.eq.s32.totalorder %s23, 0
      %p202 = por %p200, %p201
      %s203 = ssub.s32 %s24, %s36
      %s204 = ssub.s32 %s25, %s32
      %s205 = sor.u32 %s203, %s204
      %p206 = scmp.eq.s32.totalorder %s205, 0
      %s208 = sadd.s32 %s207, 1
      %s209 = scalar_select %p206, %s207, %s208
      %p212 = pneg %p206
      %p213 = scmp.eq.s32.totalorder %s17, 3
      %p214 = por %p212, %p213
      %p215 = scmp.ne.s32.totalorder %s207, %s210
      %p216 = scmp.eq.s32.totalorder %s17, 0
      %p217 = por %p215, %p216
      %p218 = scmp.ne.s32.totalorder %s207, %s210
      %p219 = scmp.eq.s32.totalorder %s22, 3
      %p220 = por %p218, %p219
      %p221 = scmp.ne.s32.totalorder %s210, %s211
      %p222 = scmp.eq.s32.totalorder %s22, 0
      %p223 = por %p221, %p222
      %p224 = scmp.ne.s32.totalorder %s210, %s211
      %p225 = scmp.eq.s32.totalorder %s23, 3
      %p226 = por %p224, %p225
      %p228 = scmp.ne.s32.totalorder %s211, %s227
      %p229 = scmp.eq.s32.totalorder %s23, 0
      %p230 = por %p228, %p229
      %p231 = scmp.le.s32.totalorder 1, %s17
      %p232 = scmp.lt.s32.totalorder %s17, 5
      %p233 = pnand %p231, %p232
      %p234 = pneg %p233
      // Predicated region
      $region9: #{self_attention.1} parent=5 // pred_check
        _
      $region10: #{self_attention.1} parent=5 // pred_check_branch
        %236 = sbr.rel (%p233) target = $region12
      $region11: #{self_attention.1} parent=5 // pred_region
        %s237 = ssub.s32 %s17, 1
        // Predicated region
        $region13: #{self_attention.1} parent=11 // pred_check
          %p238 = pneg %p104
        $region14: #{self_attention.1} parent=11 // pred_check_branch
          %240 = sbr.rel (%p238) target = $region16
        $region15: #{self_attention.1} parent=11 // pred_region
          _
        $region16: #{self_attention.1} parent=11 // pred_fallthru
          _
        // Predicated region
        $region17: #{self_attention.1} parent=11 // pred_check
          %p241 = pneg %p125
        $region18: #{self_attention.1} parent=11 // pred_check_branch
          %243 = sbr.rel (%p241) target = $region20
        $region19: #{self_attention.1} parent=11 // pred_region
          _
        $region20: #{self_attention.1} parent=11 // pred_fallthru
          _
        // Predicated region
        $region21: #{self_attention.1} parent=11 // pred_check
          %p244 = pneg %p146
        $region22: #{self_attention.1} parent=11 // pred_check_branch
          %246 = sbr.rel (%p244) target = $region24
        $region23: #{self_attention.1} parent=11 // pred_region
          _
        $region24: #{self_attention.1} parent=11 // pred_fallthru
          _
        // Predicated region
        $region25: #{self_attention.1} parent=11 // pred_check
          %p247 = pneg %p167
        $region26: #{self_attention.1} parent=11 // pred_check_branch
          %249 = sbr.rel (%p247) target = $region28
        $region27: #{self_attention.1} parent=11 // pred_region
          _
        $region28: #{self_attention.1} parent=11 // pred_fallthru
          _
      $region12: #{self_attention.1} parent=5 // pred_fallthru
        _
      %p250 = scmp.lt.s32.totalorder %s17, 4
      // Predicated region
      $region29: #{self_attention.1} parent=5 // pred_check
        %p251 = pneg %p250
      $region30: #{self_attention.1} parent=5 // pred_check_branch
        %253 = sbr.rel (%p251) target = $region32
      $region31: #{self_attention.1} parent=5 // pred_region
        // Predicated region
        $region33: #{self_attention.1} parent=31 // pred_check
          %p254 = pneg %p49
        $region34: #{self_attention.1} parent=31 // pred_check_branch
          %256 = sbr.rel (%p254) target = $region36
        $region35: #{self_attention.1} parent=31 // pred_region
          %p257 = scmp.lt.s32.totalorder %s24, 1
          %s258 = scalar_select %p257, %s24, 1
          %s259 = smul.addr %s258, 4
          %s260 = smul.addr %s259, 4
          %s261 = scalar_lea.vmem %s0, %s260
        $region36: #{self_attention.1} parent=31 // pred_fallthru
          _
        // Predicated region
        $region37: #{self_attention.1} parent=31 // pred_check
          %p262 = pneg %p77
        $region38: #{self_attention.1} parent=31 // pred_check_branch
          %264 = sbr.rel (%p262) target = $region40
        $region39: #{self_attention.1} parent=31 // pred_region
          %s265 = sand.u32 %s67, 1
          %s266 = sand.u32 %s67, 1
          %s267 = smul.addr %s266, 8
          %s268 = scalar_lea.vmem [#allocation2], %s267
          %s269 = smul.addr %s24, 4
          %s270 = sadd.s32 %s25, %s269
          %s271 = smul.addr %s270, 4
          %s272 = scalar_lea.vmem %s1, %s271
          // Predicated region
          $region41: #{self_attention.1} parent=39 // pred_check
            _
          $region42: #{self_attention.1} parent=39 // pred_check_branch
            %274 = sbr.rel (0) target = $region44
          $region43: #{self_attention.1} parent=39 // pred_region
            // Predicated region
            $region45: #{self_attention.1} parent=43 // pred_check
              _
            $region46: #{self_attention.1} parent=43 // pred_check_branch
              %276 = sbr.rel target = $region48
            $region47: #{self_attention.1} parent=43 // pred_region
              // Predicated region
              $region60: #{self_attention.1} parent=47 // pred_check
                _
              $region61: #{self_attention.1} parent=47 // pred_check_branch
                %294 = sbr.rel (0) target = $region63
              $region62: #{self_attention.1} parent=47 // pred_region
                loop: start=0, step=1, limit=1
                $region64: #{self_attention.1} parent=62 // loop_pre_header
                  _
                $region65: #{self_attention.1} parent=62 // loop_header
                  %s296 = sphi 0, %s300
                  %p297 = scmp.ge.s32.totalorder %s296, 1
                  %s301 = sphi %s272, %s272
                  %s302 = sphi %s268, %s268
                $region66: #{self_attention.1} parent=62 // loop_header_branch
                  %299 = sbr.rel (%p297) target = $region70
                $region67: #{self_attention.1} parent=62 // loop_body
                  _
                $region68: #{self_attention.1} parent=62 // loop_footer
                  %s300 = sadd.s32 1, %s296
                $region69: #{self_attention.1} parent=62 // loop_footer_branch
                  %295 = sbr.rel target = $region65
                $region70: #{self_attention.1} parent=62 // loop_exit
                  _
                %s304 = ssub.s32 16, 1
                loop: start=0, step=1, limit=1
                $region71: #{self_attention.1} parent=62 // loop_pre_header
                  _
                $region72: #{self_attention.1} parent=62 // loop_header
                  %s306 = sphi 0, %s310
                  %p307 = scmp.ge.s32.totalorder %s306, 1
                  %s311 = sphi %s272, %s272
                  %s312 = sphi %s268, %s268
                $region73: #{self_attention.1} parent=62 // loop_header_branch
                  %309 = sbr.rel (%p307) target = $region77
                $region74: #{self_attention.1} parent=62 // loop_body
                  %v313 = vld [vmem:[%s311] sm:%s304]
                  %314 = vst [vmem:[%s312] sm:%s304] %v313
                  %v315 = vld [vmem:[%s311 + $0x8] sm:%s304]
                  %316 = vst [vmem:[%s312 + $0x4] sm:%s304] %v315
                $region75: #{self_attention.1} parent=62 // loop_footer
                  %s310 = sadd.s32 1, %s306
                $region76: #{self_attention.1} parent=62 // loop_footer_branch
                  %305 = sbr.rel target = $region72
                $region77: #{self_attention.1} parent=62 // loop_exit
                  _
              $region63: #{self_attention.1} parent=47 // pred_fallthru
                _
            $region48: #{self_attention.1} parent=43 // pred_fallthru
              _
            // Predicated region
            $region49: #{self_attention.1} parent=43 // pred_check
              _
            $region50: #{self_attention.1} parent=43 // pred_check_branch
              %278 = sbr.rel (0) target = $region52
            $region51: #{self_attention.1} parent=43 // pred_region
              %s280 = ssub.s32 16, 1
              loop: start=0, step=1, limit=1
              $region53: #{self_attention.1} parent=51 // loop_pre_header
                _
              $region54: #{self_attention.1} parent=51 // loop_header
                %s282 = sphi 0, %s286
                %p283 = scmp.ge.s32.totalorder %s282, 1
                %s287 = sphi %s272, %s272
                %s288 = sphi %s268, %s268
              $region55: #{self_attention.1} parent=51 // loop_header_branch
                %285 = sbr.rel (%p283) target = $region59
              $region56: #{self_attention.1} parent=51 // loop_body
                %v289 = vld [vmem:[%s287] sm:%s280]
                %290 = vst [vmem:[%s288] sm:%s280] %v289
                %v291 = vld [vmem:[%s287 + $0x8] sm:%s280]
                %292 = vst [vmem:[%s288 + $0x4] sm:%s280] %v291
              $region57: #{self_attention.1} parent=51 // loop_footer
                %s286 = sadd.s32 1, %s282
              $region58: #{self_attention.1} parent=51 // loop_footer_branch
                %281 = sbr.rel target = $region54
              $region59: #{self_attention.1} parent=51 // loop_exit
                _
            $region52: #{self_attention.1} parent=43 // pred_fallthru
              _
          $region44: #{self_attention.1} parent=39 // pred_fallthru
            _
          %317 = vnop
        $region40: #{self_attention.1} parent=31 // pred_fallthru
          _
      $region32: #{self_attention.1} parent=5 // pred_fallthru
        _
      %p318 = scmp.le.s32.totalorder 1, %s17
      %p319 = scmp.lt.s32.totalorder %s17, 5
      %p320 = pnand %p318, %p319
      %p321 = pneg %p320
      // Predicated region
      $region78: #{self_attention.1} parent=5 // pred_check
        _
      $region79: #{self_attention.1} parent=5 // pred_check_branch
        %323 = sbr.rel (%p320) target = $region81
      $region80: #{self_attention.1} parent=5 // pred_region
        %s324 = ssub.s32 %s17, 1
        %s325 = sand.u32 %s70, 1
        %s326 = sand.u32 %s70, 1
        %s327 = smul.addr %s326, 8
        %s328 = scalar_lea.vmem [#allocation2], %s327
        // Predicated region
        $region82: #{self_attention.1} parent=80 // pred_check
          %p329 = pneg %p83
        $region83: #{self_attention.1} parent=80 // pred_check_branch
          %331 = sbr.rel (%p329) target = $region85
        $region84: #{self_attention.1} parent=80 // pred_region
          _
        $region85: #{self_attention.1} parent=80 // pred_fallthru
          _
        %p332 = scmp.lt.s32.totalorder %s26, 1
        %s333 = scalar_select %p332, %s26, 1
        %s334 = smul.addr %s333, 4
        %s335 = smul.addr %s334, 4
        %s336 = scalar_lea.vmem %s0, %s335
        %p337 = pneg %p55
        %p338 = pneg %p52
        %s339 = sand.u32 %s70, 1
        %s340 = sand.u32 %s70, 1
        %s341 = smul.addr %s340, 8
        %s342 = scalar_lea.vmem [#allocation2], %s341
        %p343 = pneg %p83
        %p344 = pneg %p80
        %p345 = pneg %p104
        %p346 = pneg %p101
        %p347 = pneg %p125
        %p348 = pneg %p122
        %p349 = pneg %p146
        %p350 = pneg %p143
        %p351 = pneg %p167
        %p352 = pneg %p164
        %p353 = pneg %p195
        %p354 = pneg %p192
        %s355 = sand.u32 %s182, 1
        %s356 = sand.u32 %s182, 1
        %s357 = smul.addr %s356, 16
        %s358 = scalar_lea.vmem [#allocation3], %s357
        %p359 = pneg %p223
        %p360 = pneg %p220
        %s361 = sand.u32 %s210, 1
        %s362 = scalar_lea.sflag [#allocation5], %s361
        %s363 = sand.u32 %s210, 1
        %s364 = smul.addr %s363, 256
        %s365 = scalar_lea.vmem [#allocation4], %s364
        %p366 = scmp.lt.s32.totalorder %s26, 1
        %s367 = scalar_select %p366, %s26, 1
        %s368 = smul.addr %s367, 4
        %s369 = smul.addr %s368, 4
        %s370 = scalar_lea.vmem %s0, %s369
        %s371 = smul.u32 16, %s27
        %v373 = vld [vmem:[%s370] sm:$0xff]
        %v374 = vld [vmem:[%s370 + $0x8] sm:$0xff]
        %v375 = vld [vmem:[%s328] sm:$0xf]
        %v376 = vld [vmem:[%s328 + $0x4] sm:$0xf]
        %v377 = vld [vmem:[%s2] sm:$0x1]
        %v378 = vld [vmem:[%s3] sm:$0x3]
        %380 = vset.pattern.permute.xlu0 0
        %381 = vperm.xlu0 %380, %v378
        %v382 = vpop.permute.xlu0 %381
        %v386 = vunpack.c.l.b16 %v375
        %v387 = vunpack.c.l.b16 %v376
        %v388 = vpack.c.b16 %v387, %v386
        %vm390 = vcmask 130048
        %v392 = vsel %vm390, %v377, 0
        %394 = vmatprep.subr.bf16.mxu0 0
        %395 = vmatpush1.bf16.msra.mxu0 0
        %396 = vmatprep.subr.bf16.mxu0 0
        %397 = vmatpush1.bf16.msra.mxu0 0
        %398 = vmatprep.subr.bf16.mxu0 0
        %399 = vmatpush1.bf16.msra.mxu0 0
        %400 = vmatprep.subr.bf16.mxu0 0
        %401 = vmatpush1.bf16.msra.mxu0 0
        %402 = vmatprep.subr.bf16.mxu0 0
        %403 = vmatpush1.bf16.msra.mxu0 0
        %404 = vmatprep.subr.bf16.mxu0 0
        %405 = vmatpush1.bf16.msra.mxu0 0
        %406 = vmatprep.subr.bf16.mxu0 0
        %407 = vmatpush1.bf16.msra.mxu0 0
        %408 = vmatprep.subr.bf16.mxu0 0
        %409 = vmatpush1.bf16.msra.mxu0 %v388
        %410 = vmatprep.subr.bf16.mxu0 0
        %411 = vmatpush2.bf16.msra.mxu0 0
        %412 = vmatprep.subr.bf16.mxu0 0
        %413 = vmatpush2.bf16.msra.mxu0 0
        %414 = vmatprep.subr.bf16.mxu0 0
        %415 = vmatpush2.bf16.msra.mxu0 0
        %416 = vmatprep.subr.bf16.mxu0 0
        %417 = vmatpush2.bf16.msra.mxu0 0
        %418 = vmatprep.subr.bf16.mxu0 0
        %419 = vmatpush2.bf16.msra.mxu0 0
        %420 = vmatprep.subr.bf16.mxu0 0
        %421 = vmatpush2.bf16.msra.mxu0 0
        %422 = vmatprep.subr.bf16.mxu0 0
        %423 = vmatpush2.bf16.msra.mxu0 0
        %424 = vmatprep.subr.bf16.mxu0 0
        %425 = vmatpush2.bf16.msra.mxu0 0
        %426 = vmatprep.mubr.bf16.mxu0 0
        %427 = vmatmul.mubr.bf16.gmra.mxu0 %v392
        %v428 = vpop.f32.mrf.mxu0
        %v429 = vadd.f32 %v382, %v428
        %v430 = vpop.f32.mrf.mxu0
        %v431 = vpop.f32.mrf.mxu0
        %v432 = vpop.f32.mrf.mxu0
        %433 = vdwg.mxu0
        %v434 = vld [vmem:[%s4] sm:$0xf]
        %v435 = vld [vmem:[%s4 + $0x4] sm:$0xf]
        %v436 = vld [vmem:[%s4 + $0x8] sm:$0x1]
        %v437 = vld [vmem:[%s5] sm:$0xff]
        %v438 = vld [vmem:[%s5 + $0x8] sm:$0xff]
        %v439 = vld [vmem:[%s5 + $0x10] sm:$0x3]
        %441 = vset.pattern.permute.xlu0 0
        %442 = vperm.xlu0 %441, %v437
        %v443 = vpop.permute.xlu0 %442
        %446 = vset.pattern.permute.xlu0 0
        %447 = vperm.xlu0 %446, %v438
        %v448 = vpop.permute.xlu0 %447
        %451 = vset.pattern.permute.xlu0 0
        %452 = vperm.xlu0 %451, %v439
        %v453 = vpop.permute.xlu0 %452
        %v458 = vunpack.c.l.b16 %v434
        %v459 = vunpack.c.l.b16 %v435
        %v460 = vunpack.c.l.b16 %v436
        %v461 = vpack.c.b16 %v459, %v458
        %v462 = vpack.c.b16 %v460, %v460
        %v465 = vunpack.c.l.b16 %v373
        %v466 = vunpack.c.h.b16 %v373
        %v467 = vunpack.c.l.b16 %v374
        %v468 = vunpack.c.h.b16 %v374
        %v469 = vpack.c.b16 %v467, %v465
        %v470 = vpack.c.b16 %v468, %v466
        %v474 = vsel %vm390, %v461, 0
        %v477 = vsel %vm390, %v462, 0
        %479 = vmatprep.subr.bf16.mxu0 0
        %480 = vmatpush1.bf16.msra.mxu0 0
        %481 = vmatprep.subr.bf16.mxu0 0
        %482 = vmatpush1.bf16.msra.mxu0 0
        %483 = vmatprep.subr.bf16.mxu0 0
        %484 = vmatpush1.bf16.msra.mxu0 0
        %485 = vmatprep.subr.bf16.mxu0 0
        %486 = vmatpush1.bf16.msra.mxu0 0
        %487 = vmatprep.subr.bf16.mxu0 0
        %488 = vmatpush1.bf16.msra.mxu0 0
        %489 = vmatprep.subr.bf16.mxu0 0
        %490 = vmatpush1.bf16.msra.mxu0 0
        %491 = vmatprep.subr.bf16.mxu0 0
        %492 = vmatpush1.bf16.msra.mxu0 0
        %493 = vmatprep.subr.bf16.mxu0 %v470
        %494 = vmatpush1.bf16.msra.mxu0 %v469
        %495 = vmatprep.subr.bf16.mxu0 0
        %496 = vmatpush2.bf16.msra.mxu0 0
        %497 = vmatprep.subr.bf16.mxu0 0
        %498 = vmatpush2.bf16.msra.mxu0 0
        %499 = vmatprep.subr.bf16.mxu0 0
        %500 = vmatpush2.bf16.msra.mxu0 0
        %501 = vmatprep.subr.bf16.mxu0 0
        %502 = vmatpush2.bf16.msra.mxu0 0
        %503 = vmatprep.subr.bf16.mxu0 0
        %504 = vmatpush2.bf16.msra.mxu0 0
        %505 = vmatprep.subr.bf16.mxu0 0
        %506 = vmatpush2.bf16.msra.mxu0 0
        %507 = vmatprep.subr.bf16.mxu0 0
        %508 = vmatpush2.bf16.msra.mxu0 0
        %509 = vmatprep.subr.bf16.mxu0 0
        %510 = vmatpush2.bf16.msra.mxu0 0
        %511 = vmatprep.mubr.bf16.mxu0 0
        %512 = vmatmul.mubr.bf16.gmra.mxu0 %v474
        %v513 = vpop.f32.mrf.mxu0
        %v514 = vadd.f32 %v443, %v513
        %v515 = vpop.f32.mrf.mxu0
        %v516 = vadd.f32 %v443, %v515
        %v517 = vpop.f32.mrf.mxu0
        %v518 = vadd.f32 %v448, %v517
        %v519 = vpop.f32.mrf.mxu0
        %v520 = vadd.f32 %v448, %v519
        %521 = vmatprep.mubr.bf16.mxu0 0
        %522 = vmatmul.mubr.bf16.gmra.mxu0 %v477
        %v523 = vpop.f32.mrf.mxu0
        %v524 = vadd.f32 %v453, %v523
        %v525 = vpop.f32.mrf.mxu0
        %v526 = vadd.f32 %v453, %v525
        %v527 = vpop.f32.mrf.mxu0
        %v528 = vpop.f32.mrf.mxu0
        %529 = vdwg.mxu0
        %530 = vxpose.xlu0.b32.start [1/16] %v429, 128
        %531 = vxpose.xlu0.b32.cont [2/16] 0.0, 128
        %532 = vxpose.xlu0.b32.cont [3/16] 0.0, 128
        %533 = vxpose.xlu0.b32.cont [4/16] 0.0, 128
        %534 = vxpose.xlu0.b32.cont [5/16] 0.0, 128
        %535 = vxpose.xlu0.b32.cont [6/16] 0.0, 128
        %536 = vxpose.xlu0.b32.cont [7/16] 0.0, 128
        %537 = vxpose.xlu0.b32.cont [8/16] 0.0, 128
        %538 = vxpose.xlu0.b32.cont [9/16] 0.0, 128
        %539 = vxpose.xlu0.b32.cont [10/16] 0.0, 128
        %540 = vxpose.xlu0.b32.cont [11/16] 0.0, 128
        %541 = vxpose.xlu0.b32.cont [12/16] 0.0, 128
        %542 = vxpose.xlu0.b32.cont [13/16] 0.0, 128
        %543 = vxpose.xlu0.b32.cont [14/16] 0.0, 128
        %544 = vxpose.xlu0.b32.cont [15/16] 0.0, 128
        %545 = vxpose.xlu0.b32.end [16/16] 0.0, 128
        %v546 = vpop.trf.xlu0
        %v547 = vpop.trf.xlu0
        %v548 = vpop.trf.xlu0
        %v549 = vpop.trf.xlu0
        %v550 = vpop.trf.xlu0
        %v551 = vpop.trf.xlu0
        %v552 = vpop.trf.xlu0
        %v553 = vpop.trf.xlu0
        %v554 = vpop.trf.xlu0
        %v555 = vpop.trf.xlu0
        %v556 = vpop.trf.xlu0
        %v557 = vpop.trf.xlu0
        %v558 = vpop.trf.xlu0
        %v559 = vpop.trf.xlu0
        %v560 = vpop.trf.xlu0
        %v561 = vpop.trf.xlu0
        %vm562 = vcmask 15360
        %v564 = vsel %vm562, %v546, 0
        %v567 = vsel %vm562, %v547, 0
        %v570 = vsel %vm562, %v548, 0
        %v573 = vsel %vm562, %v549, 0
        %v576 = vsel %vm562, %v550, 0
        %v579 = vsel %vm562, %v551, 0
        %v582 = vsel %vm562, %v552, 0
        %v585 = vsel %vm562, %v553, 0
        %v588 = vsel %vm562, %v554, 0
        %v591 = vsel %vm562, %v555, 0
        %v594 = vsel %vm562, %v556, 0
        %v597 = vsel %vm562, %v557, 0
        %v600 = vsel %vm562, %v558, 0
        %v603 = vsel %vm562, %v559, 0
        %v606 = vsel %vm562, %v560, 0
        %v609 = vsel %vm562, %v561, 0
        %vm611 = vcmask 1041408
        %v613 = vsel %vm611, %v524, 0
        %v616 = vsel %vm611, %v526, 0
        %618 = vmatprep.subr.mxu0 0.0
        %619 = vmatpush1.msra.mxu0 0.0
        %620 = vmatprep.subr.mxu0 0.0
        %621 = vmatpush1.msra.mxu0 0.0
        %622 = vmatprep.subr.mxu0 0.0
        %623 = vmatpush1.msra.mxu0 0.0
        %624 = vmatprep.subr.mxu0 0.0
        %625 = vmatpush1.msra.mxu0 0.0
        %626 = vmatprep.subr.mxu0 0.0
        %627 = vmatpush1.msra.mxu0 0.0
        %628 = vmatprep.subr.mxu0 0.0
        %629 = vmatpush1.msra.mxu0 0.0
        %630 = vmatprep.subr.mxu0 0.0
        %631 = vmatpush1.msra.mxu0 0.0
        %632 = vmatprep.subr.mxu0 0.0
        %633 = vmatpush1.msra.mxu0 0.0
        %634 = vmatprep.subr.mxu0 0.0
        %635 = vmatpush1.msra.mxu0 0.0
        %636 = vmatprep.subr.mxu0 0.0
        %637 = vmatpush1.msra.mxu0 0.0
        %638 = vmatprep.subr.mxu0 0.0
        %639 = vmatpush1.msra.mxu0 0.0
        %640 = vmatprep.subr.mxu0 0.0
        %641 = vmatpush1.msra.mxu0 0.0
        %642 = vmatprep.subr.mxu0 0.0
        %643 = vmatpush1.msra.mxu0 0.0
        %644 = vmatprep.subr.mxu0 0.0
        %645 = vmatpush1.msra.mxu0 0.0
        %646 = vmatprep.subr.mxu0 0.0
        %647 = vmatpush1.msra.mxu0 0.0
        %648 = vmatprep.subr.mxu0 %v616
        %649 = vmatpush1.msra.mxu0 %v613
        %650 = vmatprep.subr.mxu0 0.0
        %651 = vmatpush2.msra.mxu0 0.0
        %652 = vmatprep.subr.mxu0 0.0
        %653 = vmatpush2.msra.mxu0 0.0
        %654 = vmatprep.subr.mxu0 0.0
        %655 = vmatpush2.msra.mxu0 0.0
        %656 = vmatprep.subr.mxu0 0.0
        %657 = vmatpush2.msra.mxu0 0.0
        %658 = vmatprep.subr.mxu0 0.0
        %659 = vmatpush2.msra.mxu0 0.0
        %660 = vmatprep.subr.mxu0 0.0
        %661 = vmatpush2.msra.mxu0 0.0
        %662 = vmatprep.subr.mxu0 0.0
        %663 = vmatpush2.msra.mxu0 0.0
        %664 = vmatprep.subr.mxu0 0.0
        %665 = vmatpush2.msra.mxu0 0.0
        %666 = vmatprep.subr.mxu0 0.0
        %667 = vmatpush2.msra.mxu0 0.0
        %668 = vmatprep.subr.mxu0 0.0
        %669 = vmatpush2.msra.mxu0 0.0
        %670 = vmatprep.subr.mxu0 0.0
        %671 = vmatpush2.msra.mxu0 0.0
        %672 = vmatprep.subr.mxu0 0.0
        %673 = vmatpush2.msra.mxu0 0.0
        %674 = vmatprep.subr.mxu0 0.0
        %675 = vmatpush2.msra.mxu0 0.0
        %676 = vmatprep.subr.mxu0 0.0
        %677 = vmatpush2.msra.mxu0 0.0
        %678 = vmatprep.subr.mxu0 0.0
        %679 = vmatpush2.msra.mxu0 0.0
        %680 = vmatprep.subr.mxu0 0.0
        %681 = vmatpush2.msra.mxu0 0.0
        %682 = vmatprep.mubr.f32.mxu0 0.0
        %683 = vmatmul.mubr.f32.gmra.mxu0 %v564
        %v684 = vpop.f32.mrf.mxu0
        %v685 = vadd.f32 0.0, %v684
        %v686 = vpop.f32.mrf.mxu0
        %v687 = vadd.f32 0.0, %v686
        %688 = vmatprep.mubr.f32.mxu0 0.0
        %689 = vmatmul.mubr.f32.gmra.mxu0 %v567
        %v690 = vpop.f32.mrf.mxu0
        %v691 = vadd.f32 0.0, %v690
        %v692 = vpop.f32.mrf.mxu0
        %v693 = vadd.f32 0.0, %v692
        %694 = vmatprep.mubr.f32.mxu0 0.0
        %695 = vmatmul.mubr.f32.gmra.mxu0 %v570
        %v696 = vpop.f32.mrf.mxu0
        %v697 = vadd.f32 0.0, %v696
        %v698 = vpop.f32.mrf.mxu0
        %v699 = vadd.f32 0.0, %v698
        %700 = vmatprep.mubr.f32.mxu0 0.0
        %701 = vmatmul.mubr.f32.gmra.mxu0 %v573
        %v702 = vpop.f32.mrf.mxu0
        %v703 = vadd.f32 0.0, %v702
        %v704 = vpop.f32.mrf.mxu0
        %v705 = vadd.f32 0.0, %v704
        %706 = vmatprep.mubr.f32.mxu0 0.0
        %707 = vmatmul.mubr.f32.gmra.mxu0 %v576
        %v708 = vpop.f32.mrf.mxu0
        %v709 = vadd.f32 0.0, %v708
        %v710 = vpop.f32.mrf.mxu0
        %v711 = vadd.f32 0.0, %v710
        %712 = vmatprep.mubr.f32.mxu0 0.0
        %713 = vmatmul.mubr.f32.gmra.mxu0 %v579
        %v714 = vpop.f32.mrf.mxu0
        %v715 = vadd.f32 0.0, %v714
        %v716 = vpop.f32.mrf.mxu0
        %v717 = vadd.f32 0.0, %v716
        %718 = vmatprep.mubr.f32.mxu0 0.0
        %719 = vmatmul.mubr.f32.gmra.mxu0 %v582
        %v720 = vpop.f32.mrf.mxu0
        %v721 = vadd.f32 0.0, %v720
        %v722 = vpop.f32.mrf.mxu0
        %v723 = vadd.f32 0.0, %v722
        %724 = vmatprep.mubr.f32.mxu0 0.0
        %725 = vmatmul.mubr.f32.gmra.mxu0 %v585
        %v726 = vpop.f32.mrf.mxu0
        %v727 = vadd.f32 0.0, %v726
        %v728 = vpop.f32.mrf.mxu0
        %v729 = vadd.f32 0.0, %v728
        %730 = vmatprep.mubr.f32.mxu0 0.0
        %731 = vmatmul.mubr.f32.gmra.mxu0 %v588
        %v732 = vpop.f32.mrf.mxu0
        %v733 = vadd.f32 0.0, %v732
        %v734 = vpop.f32.mrf.mxu0
        %v735 = vadd.f32 0.0, %v734
        %736 = vmatprep.mubr.f32.mxu0 0.0
        %737 = vmatmul.mubr.f32.gmra.mxu0 %v591
        %v738 = vpop.f32.mrf.mxu0
        %v739 = vadd.f32 0.0, %v738
        %v740 = vpop.f32.mrf.mxu0
        %v741 = vadd.f32 0.0, %v740
        %742 = vmatprep.mubr.f32.mxu0 0.0
        %743 = vmatmul.mubr.f32.gmra.mxu0 %v594
        %v744 = vpop.f32.mrf.mxu0
        %v745 = vadd.f32 0.0, %v744
        %v746 = vpop.f32.mrf.mxu0
        %v747 = vadd.f32 0.0, %v746
        %748 = vmatprep.mubr.f32.mxu0 0.0
        %749 = vmatmul.mubr.f32.gmra.mxu0 %v597
        %v750 = vpop.f32.mrf.mxu0
        %v751 = vadd.f32 0.0, %v750
        %v752 = vpop.f32.mrf.mxu0
        %v753 = vadd.f32 0.0, %v752
        %754 = vmatprep.mubr.f32.mxu0 0.0
        %755 = vmatmul.mubr.f32.gmra.mxu0 %v600
        %v756 = vpop.f32.mrf.mxu0
        %v757 = vadd.f32 0.0, %v756
        %v758 = vpop.f32.mrf.mxu0
        %v759 = vadd.f32 0.0, %v758
        %760 = vmatprep.mubr.f32.mxu0 0.0
        %761 = vmatmul.mubr.f32.gmra.mxu0 %v603
        %v762 = vpop.f32.mrf.mxu0
        %v763 = vadd.f32 0.0, %v762
        %v764 = vpop.f32.mrf.mxu0
        %v765 = vadd.f32 0.0, %v764
        %766 = vmatprep.mubr.f32.mxu0 0.0
        %767 = vmatmul.mubr.f32.gmra.mxu0 %v606
        %v768 = vpop.f32.mrf.mxu0
        %v769 = vadd.f32 0.0, %v768
        %v770 = vpop.f32.mrf.mxu0
        %v771 = vadd.f32 0.0, %v770
        %772 = vmatprep.mubr.f32.mxu0 0.0
        %773 = vmatmul.mubr.f32.gmra.mxu0 %v609
        %v774 = vpop.f32.mrf.mxu0
        %v775 = vadd.f32 0.0, %v774
        %v776 = vpop.f32.mrf.mxu0
        %v777 = vadd.f32 0.0, %v776
        %778 = vdwg.mxu0
        %v779 = vmax.f32 %v685, %v687
        %780 = vmax.xlane.f32.xlu0 %v779
        %v781 = vpop.xlane.xlu0 %780
        %v782 = vmax.f32 %v691, %v693
        %783 = vmax.xlane.f32.xlu0 %v782
        %v784 = vpop.xlane.xlu0 %783
        %v785 = vmax.f32 %v697, %v699
        %786 = vmax.xlane.f32.xlu0 %v785
        %v787 = vpop.xlane.xlu0 %786
        %v788 = vmax.f32 %v703, %v705
        %789 = vmax.xlane.f32.xlu0 %v788
        %v790 = vpop.xlane.xlu0 %789
        %v791 = vmax.f32 %v709, %v711
        %792 = vmax.xlane.f32.xlu0 %v791
        %v793 = vpop.xlane.xlu0 %792
        %v794 = vmax.f32 %v715, %v717
        %795 = vmax.xlane.f32.xlu0 %v794
        %v796 = vpop.xlane.xlu0 %795
        %v797 = vmax.f32 %v721, %v723
        %798 = vmax.xlane.f32.xlu0 %v797
        %v799 = vpop.xlane.xlu0 %798
        %v800 = vmax.f32 %v727, %v729
        %801 = vmax.xlane.f32.xlu0 %v800
        %v802 = vpop.xlane.xlu0 %801
        %v803 = vmax.f32 %v733, %v735
        %804 = vmax.xlane.f32.xlu0 %v803
        %v805 = vpop.xlane.xlu0 %804
        %v806 = vmax.f32 %v739, %v741
        %807 = vmax.xlane.f32.xlu0 %v806
        %v808 = vpop.xlane.xlu0 %807
        %v809 = vmax.f32 %v745, %v747
        %810 = vmax.xlane.f32.xlu0 %v809
        %v811 = vpop.xlane.xlu0 %810
        %v812 = vmax.f32 %v751, %v753
        %813 = vmax.xlane.f32.xlu0 %v812
        %v814 = vpop.xlane.xlu0 %813
        %v815 = vmax.f32 %v757, %v759
        %816 = vmax.xlane.f32.xlu0 %v815
        %v817 = vpop.xlane.xlu0 %816
        %v818 = vmax.f32 %v763, %v765
        %819 = vmax.xlane.f32.xlu0 %v818
        %v820 = vpop.xlane.xlu0 %819
        %v821 = vmax.f32 %v769, %v771
        %822 = vmax.xlane.f32.xlu0 %v821
        %v823 = vpop.xlane.xlu0 %822
        %v824 = vmax.f32 %v775, %v777
        %825 = vmax.xlane.f32.xlu0 %v824
        %v826 = vpop.xlane.xlu0 %825
        %v827 = vsub.f32 %v685, %v781
        %v828 = vsub.f32 %v687, %v781
        %v829 = vsub.f32 %v691, %v784
        %v830 = vsub.f32 %v693, %v784
        %v831 = vsub.f32 %v697, %v787
        %v832 = vsub.f32 %v699, %v787
        %v833 = vsub.f32 %v703, %v790
        %v834 = vsub.f32 %v705, %v790
        %v835 = vsub.f32 %v709, %v793
        %v836 = vsub.f32 %v711, %v793
        %v837 = vsub.f32 %v715, %v796
        %v838 = vsub.f32 %v717, %v796
        %v839 = vsub.f32 %v721, %v799
        %v840 = vsub.f32 %v723, %v799
        %v841 = vsub.f32 %v727, %v802
        %v842 = vsub.f32 %v729, %v802
        %v843 = vsub.f32 %v733, %v805
        %v844 = vsub.f32 %v735, %v805
        %v845 = vsub.f32 %v739, %v808
        %v846 = vsub.f32 %v741, %v808
        %v847 = vsub.f32 %v745, %v811
        %v848 = vsub.f32 %v747, %v811
        %v849 = vsub.f32 %v751, %v814
        %v850 = vsub.f32 %v753, %v814
        %v851 = vsub.f32 %v757, %v817
        %v852 = vsub.f32 %v759, %v817
        %v853 = vsub.f32 %v763, %v820
        %v854 = vsub.f32 %v765, %v820
        %v855 = vsub.f32 %v769, %v823
        %v856 = vsub.f32 %v771, %v823
        %v857 = vsub.f32 %v775, %v826
        %v858 = vsub.f32 %v777, %v826
        %v859 = vmul.f32 %v827, 1.442695
        %v860 = vpow.pop %v859
        %v861 = vmul.f32 %v828, 1.442695
        %v862 = vpow.pop %v861
        %v863 = vmul.f32 %v829, 1.442695
        %v864 = vpow.pop %v863
        %v865 = vmul.f32 %v830, 1.442695
        %v866 = vpow.pop %v865
        %v867 = vmul.f32 %v831, 1.442695
        %v868 = vpow.pop %v867
        %v869 = vmul.f32 %v832, 1.442695
        %v870 = vpow.pop %v869
        %v871 = vmul.f32 %v833, 1.442695
        %v872 = vpow.pop %v871
        %v873 = vmul.f32 %v834, 1.442695
        %v874 = vpow.pop %v873
        %v875 = vmul.f32 %v835, 1.442695
        %v876 = vpow.pop %v875
        %v877 = vmul.f32 %v836, 1.442695
        %v878 = vpow.pop %v877
        %v879 = vmul.f32 %v837, 1.442695
        %v880 = vpow.pop %v879
        %v881 = vmul.f32 %v838, 1.442695
        %v882 = vpow.pop %v881
        %v883 = vmul.f32 %v839, 1.442695
        %v884 = vpow.pop %v883
        %v885 = vmul.f32 %v840, 1.442695
        %v886 = vpow.pop %v885
        %v887 = vmul.f32 %v841, 1.442695
        %v888 = vpow.pop %v887
        %v889 = vmul.f32 %v842, 1.442695
        %v890 = vpow.pop %v889
        %v891 = vmul.f32 %v843, 1.442695
        %v892 = vpow.pop %v891
        %v893 = vmul.f32 %v844, 1.442695
        %v894 = vpow.pop %v893
        %v895 = vmul.f32 %v845, 1.442695
        %v896 = vpow.pop %v895
        %v897 = vmul.f32 %v846, 1.442695
        %v898 = vpow.pop %v897
        %v899 = vmul.f32 %v847, 1.442695
        %v900 = vpow.pop %v899
        %v901 = vmul.f32 %v848, 1.442695
        %v902 = vpow.pop %v901
        %v903 = vmul.f32 %v849, 1.442695
        %v904 = vpow.pop %v903
        %v905 = vmul.f32 %v850, 1.442695
        %v906 = vpow.pop %v905
        %v907 = vmul.f32 %v851, 1.442695
        %v908 = vpow.pop %v907
        %v909 = vmul.f32 %v852, 1.442695
        %v910 = vpow.pop %v909
        %v911 = vmul.f32 %v853, 1.442695
        %v912 = vpow.pop %v911
        %v913 = vmul.f32 %v854, 1.442695
        %v914 = vpow.pop %v913
        %v915 = vmul.f32 %v855, 1.442695
        %v916 = vpow.pop %v915
        %v917 = vmul.f32 %v856, 1.442695
        %v918 = vpow.pop %v917
        %v919 = vmul.f32 %v857, 1.442695
        %v920 = vpow.pop %v919
        %v921 = vmul.f32 %v858, 1.442695
        %v922 = vpow.pop %v921
        %v923 = vadd.f32 %v860, %v862
        %924 = vadd.xlane.f32.xlu0 %v923
        %v925 = vpop.xlane.xlu0 %924
        %v926 = vadd.f32 %v864, %v866
        %927 = vadd.xlane.f32.xlu0 %v926
        %v928 = vpop.xlane.xlu0 %927
        %v929 = vadd.f32 %v868, %v870
        %930 = vadd.xlane.f32.xlu0 %v929
        %v931 = vpop.xlane.xlu0 %930
        %v932 = vadd.f32 %v872, %v874
        %933 = vadd.xlane.f32.xlu0 %v932
        %v934 = vpop.xlane.xlu0 %933
        %v935 = vadd.f32 %v876, %v878
        %936 = vadd.xlane.f32.xlu0 %v935
        %v937 = vpop.xlane.xlu0 %936
        %v938 = vadd.f32 %v880, %v882
        %939 = vadd.xlane.f32.xlu0 %v938
        %v940 = vpop.xlane.xlu0 %939
        %v941 = vadd.f32 %v884, %v886
        %942 = vadd.xlane.f32.xlu0 %v941
        %v943 = vpop.xlane.xlu0 %942
        %v944 = vadd.f32 %v888, %v890
        %945 = vadd.xlane.f32.xlu0 %v944
        %v946 = vpop.xlane.xlu0 %945
        %v947 = vadd.f32 %v892, %v894
        %948 = vadd.xlane.f32.xlu0 %v947
        %v949 = vpop.xlane.xlu0 %948
        %v950 = vadd.f32 %v896, %v898
        %951 = vadd.xlane.f32.xlu0 %v950
        %v952 = vpop.xlane.xlu0 %951
        %v953 = vadd.f32 %v900, %v902
        %954 = vadd.xlane.f32.xlu0 %v953
        %v955 = vpop.xlane.xlu0 %954
        %v956 = vadd.f32 %v904, %v906
        %957 = vadd.xlane.f32.xlu0 %v956
        %v958 = vpop.xlane.xlu0 %957
        %v959 = vadd.f32 %v908, %v910
        %960 = vadd.xlane.f32.xlu0 %v959
        %v961 = vpop.xlane.xlu0 %960
        %v962 = vadd.f32 %v912, %v914
        %963 = vadd.xlane.f32.xlu0 %v962
        %v964 = vpop.xlane.xlu0 %963
        %v965 = vadd.f32 %v916, %v918
        %966 = vadd.xlane.f32.xlu0 %v965
        %v967 = vpop.xlane.xlu0 %966
        %v968 = vadd.f32 %v920, %v922
        %969 = vadd.xlane.f32.xlu0 %v968
        %v970 = vpop.xlane.xlu0 %969
        %v971 = vrcp.pop %v925
        %v972 = vrcp.pop %v928
        %v973 = vrcp.pop %v931
        %v974 = vrcp.pop %v934
        %v975 = vrcp.pop %v937
        %v976 = vrcp.pop %v940
        %v977 = vrcp.pop %v943
        %v978 = vrcp.pop %v946
        %v979 = vrcp.pop %v949
        %v980 = vrcp.pop %v952
        %v981 = vrcp.pop %v955
        %v982 = vrcp.pop %v958
        %v983 = vrcp.pop %v961
        %v984 = vrcp.pop %v964
        %v985 = vrcp.pop %v967
        %v986 = vrcp.pop %v970
        %v987 = vmul.f32 %v860, %v971
        %v988 = vmul.f32 %v862, %v971
        %v989 = vmul.f32 %v864, %v972
        %v990 = vmul.f32 %v866, %v972
        %v991 = vmul.f32 %v868, %v973
        %v992 = vmul.f32 %v870, %v973
        %v993 = vmul.f32 %v872, %v974
        %v994 = vmul.f32 %v874, %v974
        %v995 = vmul.f32 %v876, %v975
        %v996 = vmul.f32 %v878, %v975
        %v997 = vmul.f32 %v880, %v976
        %v998 = vmul.f32 %v882, %v976
        %v999 = vmul.f32 %v884, %v977
        %v1000 = vmul.f32 %v886, %v977
        %v1001 = vmul.f32 %v888, %v978
        %v1002 = vmul.f32 %v890, %v978
        %v1003 = vmul.f32 %v892, %v979
        %v1004 = vmul.f32 %v894, %v979
        %v1005 = vmul.f32 %v896, %v980
        %v1006 = vmul.f32 %v898, %v980
        %v1007 = vmul.f32 %v900, %v981
        %v1008 = vmul.f32 %v902, %v981
        %v1009 = vmul.f32 %v904, %v982
        %v1010 = vmul.f32 %v906, %v982
        %v1011 = vmul.f32 %v908, %v983
        %v1012 = vmul.f32 %v910, %v983
        %v1013 = vmul.f32 %v912, %v984
        %v1014 = vmul.f32 %v914, %v984
        %v1015 = vmul.f32 %v916, %v985
        %v1016 = vmul.f32 %v918, %v985
        %v1017 = vmul.f32 %v920, %v986
        %v1018 = vmul.f32 %v922, %v986
        %1019 = vst [vmem:[%s365] sm:$0xff] %v987
        %1020 = vst [vmem:[%s365 + $0x8] sm:$0xff] %v988
        %1021 = vst [vmem:[%s365 + $0x10] sm:$0xff] %v989
        %1022 = vst [vmem:[%s365 + $0x18] sm:$0xff] %v990
        %1023 = vst [vmem:[%s365 + $0x20] sm:$0xff] %v991
        %1024 = vst [vmem:[%s365 + $0x28] sm:$0xff] %v992
        %1025 = vst [vmem:[%s365 + $0x30] sm:$0xff] %v993
        %1026 = vst [vmem:[%s365 + $0x38] sm:$0xff] %v994
        %1027 = vst [vmem:[%s365 + $0x40] sm:$0xff] %v995
        %1028 = vst [vmem:[%s365 + $0x48] sm:$0xff] %v996
        %1029 = vst [vmem:[%s365 + $0x50] sm:$0xff] %v997
        %1030 = vst [vmem:[%s365 + $0x58] sm:$0xff] %v998
        %1031 = vst [vmem:[%s365 + $0x60] sm:$0xff] %v999
        %1032 = vst [vmem:[%s365 + $0x68] sm:$0xff] %v1000
        %1033 = vst [vmem:[%s365 + $0x70] sm:$0xff] %v1001
        %1034 = vst [vmem:[%s365 + $0x78] sm:$0xff] %v1002
        %1035 = vst [vmem:[%s365 + $0x80] sm:$0xff] %v1003
        %1036 = vst [vmem:[%s365 + $0x88] sm:$0xff] %v1004
        %1037 = vst [vmem:[%s365 + $0x90] sm:$0xff] %v1005
        %1038 = vst [vmem:[%s365 + $0x98] sm:$0xff] %v1006
        %1039 = vst [vmem:[%s365 + $0xa0] sm:$0xff] %v1007
        %1040 = vst [vmem:[%s365 + $0xa8] sm:$0xff] %v1008
        %1041 = vst [vmem:[%s365 + $0xb0] sm:$0xff] %v1009
        %1042 = vst [vmem:[%s365 + $0xb8] sm:$0xff] %v1010
        %1043 = vst [vmem:[%s365 + $0xc0] sm:$0xff] %v1011
        %1044 = vst [vmem:[%s365 + $0xc8] sm:$0xff] %v1012
        %1045 = vst [vmem:[%s365 + $0xd0] sm:$0xff] %v1013
        %1046 = vst [vmem:[%s365 + $0xd8] sm:$0xff] %v1014
        %1047 = vst [vmem:[%s365 + $0xe0] sm:$0xff] %v1015
        %1048 = vst [vmem:[%s365 + $0xe8] sm:$0xff] %v1016
        %1049 = vst [vmem:[%s365 + $0xf0] sm:$0xff] %v1017
        %1050 = vst [vmem:[%s365 + $0xf8] sm:$0xff] %v1018
        %v1051 = vpack.c.bf16 %v518, %v514
        %v1052 = vpack.c.bf16 %v520, %v516
        %v1053 = vpack.c.bf16 %v989, %v987
        %v1054 = vpack.c.bf16 %v990, %v988
        %v1055 = vpack.c.bf16 %v993, %v991
        %v1056 = vpack.c.bf16 %v994, %v992
        %v1057 = vpack.c.bf16 %v997, %v995
        %v1058 = vpack.c.bf16 %v998, %v996
        %v1059 = vpack.c.bf16 %v1001, %v999
        %v1060 = vpack.c.bf16 %v1002, %v1000
        %v1061 = vpack.c.bf16 %v1005, %v1003
        %v1062 = vpack.c.bf16 %v1006, %v1004
        %v1063 = vpack.c.bf16 %v1009, %v1007
        %v1064 = vpack.c.bf16 %v1010, %v1008
        %v1065 = vpack.c.bf16 %v1013, %v1011
        %v1066 = vpack.c.bf16 %v1014, %v1012
        %v1067 = vpack.c.bf16 %v1017, %v1015
        %v1068 = vpack.c.bf16 %v1018, %v1016
        %1069 = vmatprep.subr.bf16.mxu0 %v1068
        %1070 = vmatpush1.bf16.xpose.msra.mxu0 %v1067
        %1071 = vmatprep.subr.bf16.mxu0 %v1066
        %1072 = vmatpush1.bf16.xpose.msra.mxu0 %v1065
        %1073 = vmatprep.subr.bf16.mxu0 %v1064
        %1074 = vmatpush1.bf16.xpose.msra.mxu0 %v1063
        %1075 = vmatprep.subr.bf16.mxu0 %v1062
        %1076 = vmatpush1.bf16.xpose.msra.mxu0 %v1061
        %1077 = vmatprep.subr.bf16.mxu0 %v1060
        %1078 = vmatpush1.bf16.xpose.msra.mxu0 %v1059
        %1079 = vmatprep.subr.bf16.mxu0 %v1058
        %1080 = vmatpush1.bf16.xpose.msra.mxu0 %v1057
        %1081 = vmatprep.subr.bf16.mxu0 %v1056
        %1082 = vmatpush1.bf16.xpose.msra.mxu0 %v1055
        %1083 = vmatprep.subr.bf16.mxu0 %v1054
        %1084 = vmatpush1.bf16.xpose.msra.mxu0 %v1053
        %1085 = vmatprep.subr.bf16.mxu0 0
        %1086 = vmatpush2.bf16.xpose.msra.mxu0 0
        %1087 = vmatprep.subr.bf16.mxu0 0
        %1088 = vmatpush2.bf16.xpose.msra.mxu0 0
        %1089 = vmatprep.subr.bf16.mxu0 0
        %1090 = vmatpush2.bf16.xpose.msra.mxu0 0
        %1091 = vmatprep.subr.bf16.mxu0 0
        %1092 = vmatpush2.bf16.xpose.msra.mxu0 0
        %1093 = vmatprep.subr.bf16.mxu0 0
        %1094 = vmatpush2.bf16.xpose.msra.mxu0 0
        %1095 = vmatprep.subr.bf16.mxu0 0
        %1096 = vmatpush2.bf16.xpose.msra.mxu0 0
        %1097 = vmatprep.subr.bf16.mxu0 0
        %1098 = vmatpush2.bf16.xpose.msra.mxu0 0
        %1099 = vmatprep.subr.bf16.mxu0 0
        %1100 = vmatpush2.bf16.xpose.msra.mxu0 0
        %1101 = vmatprep.mubr.bf16.mxu0 %v1052
        %1102 = vmatmul.mubr.bf16.gmra.mxu0 %v1051
        %v1103 = vpop.f32.mrf.mxu0
        %v1104 = vadd.f32 0.0, %v1103
        %v1105 = vpop.f32.mrf.mxu0
        %v1106 = vpop.f32.mrf.mxu0
        %v1107 = vadd.f32 0.0, %v1106
        %v1108 = vpop.f32.mrf.mxu0
        %1109 = vdwg.mxu0
        %1110 = vst [vmem:[%s358] sm:$0xff] %v1104
        %1111 = vst [vmem:[%s358 + $0x8] sm:$0xff] %v1107
        %s1112 = sand.u32 %s182, 1
        %s1113 = sand.u32 %s182, 1
        %s1114 = smul.addr %s1113, 16
        %s1115 = scalar_lea.vmem [#allocation3], %s1114
        %s1116 = sand.u32 %s210, 1
        %s1117 = scalar_lea.sflag [#allocation5], %s1116
        %s1118 = sand.u32 %s210, 1
        %s1119 = smul.addr %s1118, 256
        %s1120 = scalar_lea.vmem [#allocation4], %s1119
        // Predicated region
        $region86: #{self_attention.1} parent=80 // pred_check
          %p1121 = pneg %p192
        $region87: #{self_attention.1} parent=80 // pred_check_branch
          %1123 = sbr.rel (%p1121) target = $region89
        $region88: #{self_attention.1} parent=80 // pred_region
          %s1124 = smul.addr %s26, 4
          %s1125 = sadd.s32 %s27, %s1124
          %s1126 = smul.addr %s1125, 8
          %s1127 = scalar_lea.vmem %s6, %s1126
          // Predicated region
          $region90: #{self_attention.1} parent=88 // pred_check
            _
          $region91: #{self_attention.1} parent=88 // pred_check_branch
            %1129 = sbr.rel (0) target = $region93
          $region92: #{self_attention.1} parent=88 // pred_region
            // Predicated region
            $region94: #{self_attention.1} parent=92 // pred_check
              _
            $region95: #{self_attention.1} parent=92 // pred_check_branch
              %1131 = sbr.rel (0) target = $region97
            $region96: #{self_attention.1} parent=92 // pred_region
              // Predicated region
              $region109: #{self_attention.1} parent=96 // pred_check
                _
              $region110: #{self_attention.1} parent=96 // pred_check_branch
                %1149 = sbr.rel (0) target = $region112
              $region111: #{self_attention.1} parent=96 // pred_region
                loop: start=0, step=1, limit=1
                $region113: #{self_attention.1} parent=111 // loop_pre_header
                  _
                $region114: #{self_attention.1} parent=111 // loop_header
                  %s1151 = sphi 0, %s1155
                  %p1152 = scmp.ge.s32.totalorder %s1151, 1
                  %s1156 = sphi %s1115, %s1115
                  %s1157 = sphi %s1127, %s1127
                $region115: #{self_attention.1} parent=111 // loop_header_branch
                  %1154 = sbr.rel (%p1152) target = $region119
                $region116: #{self_attention.1} parent=111 // loop_body
                  %v1158 = vld [vmem:[%s1156] sm:$0xff]
                  %1159 = vst [vmem:[%s1157] sm:$0xff] %v1158
                  %v1160 = vld [vmem:[%s1156 + $0x8] sm:$0xff]
                  %1161 = vst [vmem:[%s1157 + $0x10] sm:$0xff] %v1160
                $region117: #{self_attention.1} parent=111 // loop_footer
                  %s1155 = sadd.s32 1, %s1151
                $region118: #{self_attention.1} parent=111 // loop_footer_branch
                  %1150 = sbr.rel target = $region114
                $region119: #{self_attention.1} parent=111 // loop_exit
                  _
              $region112: #{self_attention.1} parent=96 // pred_fallthru
                _
              // Predicated region
              $region120: #{self_attention.1} parent=96 // pred_check
                _
              $region121: #{self_attention.1} parent=96 // pred_check_branch
                %1163 = sbr.rel target = $region123
              $region122: #{self_attention.1} parent=96 // pred_region
                _
              $region123: #{self_attention.1} parent=96 // pred_fallthru
                _
            $region97: #{self_attention.1} parent=92 // pred_fallthru
              _
            // Predicated region
            $region98: #{self_attention.1} parent=92 // pred_check
              _
            $region99: #{self_attention.1} parent=92 // pred_check_branch
              %1133 = sbr.rel target = $region101
            $region100: #{self_attention.1} parent=92 // pred_region
              %s1135 = ssub.s32 256, 1
              loop: start=0, step=1, limit=1
              $region102: #{self_attention.1} parent=100 // loop_pre_header
                _
              $region103: #{self_attention.1} parent=100 // loop_header
                %s1137 = sphi 0, %s1141
                %p1138 = scmp.ge.s32.totalorder %s1137, 1
                %s1142 = sphi %s1115, %s1115
                %s1143 = sphi %s1127, %s1127
              $region104: #{self_attention.1} parent=100 // loop_header_branch
                %1140 = sbr.rel (%p1138) target = $region108
              $region105: #{self_attention.1} parent=100 // loop_body
                %v1144 = vld [vmem:[%s1142] sm:%s1135]
                %1145 = vst [vmem:[%s1143] sm:%s1135] %v1144
                %v1146 = vld [vmem:[%s1142 + $0x8] sm:%s1135]
                %1147 = vst [vmem:[%s1143 + $0x10] sm:%s1135] %v1146
              $region106: #{self_attention.1} parent=100 // loop_footer
                %s1141 = sadd.s32 1, %s1137
              $region107: #{self_attention.1} parent=100 // loop_footer_branch
                %1136 = sbr.rel target = $region103
              $region108: #{self_attention.1} parent=100 // loop_exit
                _
            $region101: #{self_attention.1} parent=92 // pred_fallthru
              _
          $region93: #{self_attention.1} parent=88 // pred_fallthru
            _
          %1164 = vnop
        $region89: #{self_attention.1} parent=80 // pred_fallthru
          _
        // Predicated region
        $region124: #{self_attention.1} parent=80 // pred_check
          %p1165 = pneg %p220
        $region125: #{self_attention.1} parent=80 // pred_check_branch
          %1167 = sbr.rel (%p1165) target = $region127
        $region126: #{self_attention.1} parent=80 // pred_region
          %s1168 = smul.u32 16, %s27
          %s1170 = ssub.s32 4096, 4096
          %1171 = vsyncadd %s1117, %s1170
          %s1172 = smul.addr %s1168, 2
          %s1173 = smul.addr %s26, 64
          %s1174 = sadd.s32 %s1172, %s1173
          %s1175 = smul.addr %s1174, 128
          %s1176 = scalar_lea.hbm %s7, %s1175
          %s1177 = sshll.u32 %s1120, 4
          %s1178 = int_to_ptr.vmem [resolvable:$true] %s1177
          %1183 = dma.vmem_to_hbm [thread:$0]  %s1178, 4096, %s1176, %s1117, 256, 256, 16
        $region127: #{self_attention.1} parent=80 // pred_fallthru
          _
      $region81: #{self_attention.1} parent=5 // pred_fallthru
        _
      %p1184 = scmp.le.s32.totalorder 2, %s17
      // Predicated region
      $region128: #{self_attention.1} parent=5 // pred_check
        %p1185 = pneg %p1184
      $region129: #{self_attention.1} parent=5 // pred_check_branch
        %1187 = sbr.rel (%p1185) target = $region131
      $region130: #{self_attention.1} parent=5 // pred_region
        %s1188 = ssub.s32 %s17, 2
        // Predicated region
        $region132: #{self_attention.1} parent=130 // pred_check
          %p1189 = pneg %p198
        $region133: #{self_attention.1} parent=130 // pred_check_branch
          %1191 = sbr.rel (%p1189) target = $region135
        $region134: #{self_attention.1} parent=130 // pred_region
          %s1192 = sand.u32 %s183, 1
          %s1193 = sand.u32 %s183, 1
          %s1194 = smul.addr %s1193, 16
          %s1195 = scalar_lea.vmem [#allocation3], %s1194
        $region135: #{self_attention.1} parent=130 // pred_fallthru
          _
        // Predicated region
        $region136: #{self_attention.1} parent=130 // pred_check
          %p1196 = pneg %p226
        $region137: #{self_attention.1} parent=130 // pred_check_branch
          %1198 = sbr.rel (%p1196) target = $region139
        $region138: #{self_attention.1} parent=130 // pred_region
          %s1199 = sand.u32 %s211, 1
          %s1200 = scalar_lea.sflag [#allocation5], %s1199
          %s1201 = sand.u32 %s211, 1
          %s1202 = smul.addr %s1201, 256
          %s1203 = scalar_lea.vmem [#allocation4], %s1202
          %1204 = dma.done %s1200, 4096
        $region139: #{self_attention.1} parent=130 // pred_fallthru
          _
      $region131: #{self_attention.1} parent=5 // pred_fallthru
        _
    $region6: #{self_attention.1} parent=1 // loop_footer
      %s21 = sadd.s32 1, %s17
    $region7: #{self_attention.1} parent=1 // loop_footer_branch
      %16 = sbr.rel target = $region3
    $region8: #{self_attention.1} parent=1 // loop_exit
      _
    %1205 = vsyncpa [#allocation5], 1
    %s1206 = scalar_lea.sflag [#allocation5], 1
    %1207 = vsyncpa %s1206, 1

</llo_original>
